<compile_context>
chip_gen: v6e
topology: v6e:2x2x1
jax: 0.10.0
libtpu: 0.0.40
codegen_flags: <defaults>
</compile_context>

<pallas_src>
import jax
import jax.numpy as jnp
from jax.experimental import pallas as pl
from jax.experimental.pallas import tpu as pltpu


def pooler_kernel(x_ref, wt_ref, b_ref, o_ref):
    # x_ref: [TM, H_in], wt_ref: [H_in, H_out] (pre-transposed in the wrapper),
    # b_ref: [1, H_out], o_ref: [TM, H_out]
    y = jnp.dot(x_ref[...], wt_ref[...], preferred_element_type=jnp.float32)
    y = y + b_ref[...].astype(jnp.float32)            # broadcast bias over rows
    o_ref[...] = jnp.tanh(y).astype(o_ref.dtype)


def _ceil_div(a, b):
    return -(-a // b)


def _round_up(a, b):
    return _ceil_div(a, b) * b


def _round_down(a, b):
    return max(b, (a // b) * b)


def _default_vmem_limit_bytes():
    # 3/4 of per-core VMEM: ~96 MiB on 128 MiB parts (v5e/v6e), ~48 MiB on v7x.
    try:
        cap = int(pltpu.get_tpu_info().vmem_capacity_bytes)
    except Exception:
        cap = 64 * 1024 * 1024
    return min((cap * 3) // 4, 112 * 1024 * 1024)


def pooler_forward(hidden_states, weight, bias, *, tm=1024, compute_dtype=None):
    """hidden_states: [..., H_in]; weight: [H_out, H_in] (PyTorch layout); bias: [H_out]."""
    *lead, h_in = hidden_states.shape
    h_out = weight.shape[0]
    out_dtype = hidden_states.dtype

    m = 1
    for d in lead:
        m *= d

    x2d = hidden_states.reshape(m, h_in)
    # One tiny wrapper-side pass: weight becomes [H_in, H_out] so the in-kernel
    # contraction is canonical for the MXU (no per-step weight transpose).
    w_t = weight.T
    b2d = bias.reshape(1, h_out)

    if compute_dtype is not None:
        x2d = x2d.astype(compute_dtype)
        w_t = w_t.astype(compute_dtype)

    align = 16 if x2d.dtype == jnp.bfloat16 else 8

    # Row-tile size: full extent if it fits, else aligned to the sublane packing.
    if m <= tm:
        tm_eff = m
        grid_m = 1
    else:
        tm_eff = _round_down(int(tm), align)
        grid_m = _ceil_div(m, tm_eff)
        # Megacore balance (v7x): prefer an even number of row tiles so both
        # TensorCores get work under the "parallel" grid axis.
        if grid_m > 1 and grid_m % 2 == 1:
            alt_tm = _round_up(_ceil_div(m, grid_m + 1), align)
            alt_grid = _ceil_div(m, alt_tm)
            if alt_grid % 2 == 0:
                tm_eff, grid_m = alt_tm, alt_grid

    flops = 2 * m * h_in * h_out
    bytes_accessed = (
        m * h_in * x2d.dtype.itemsize
        + h_in * h_out * w_t.dtype.itemsize
        + h_out * b2d.dtype.itemsize
        + m * h_out * jnp.dtype(out_dtype).itemsize
    )
    cost = pl.CostEstimate(
        flops=flops, transcendentals=m * h_out, bytes_accessed=bytes_accessed
    )

    vmem_limit = _default_vmem_limit_bytes()
    x_buffers = 3 if h_in <= 512 else 2  # deeper pipeline when tiles are tiny

    def _specs(with_buffering):
        def spec(shape, index_map, buffers):
            if with_buffering and buffers is not None:
                return pl.BlockSpec(shape, index_map,
                                    pipeline_mode=pl.Buffered(buffers))
            return pl.BlockSpec(shape, index_map)

        in_specs = [
            spec((tm_eff, h_in), lambda i: (i, 0), x_buffers),  # x row tile
            spec((h_in, h_out), lambda i: (0, 0), 1),           # W^T, resident, 1 buffer
            spec((1, h_out), lambda i: (0, 0), 1),              # bias, resident, 1 buffer
        ]
        out_specs = pl.BlockSpec((tm_eff, h_out), lambda i: (i, 0))
        return in_specs, out_specs

    def _run(with_buffering):
        in_specs, out_specs = _specs(with_buffering)
        return pl.pallas_call(
            pooler_kernel,
            out_shape=jax.ShapeDtypeStruct((m, h_out), out_dtype),
            grid_spec=pltpu.PrefetchScalarGridSpec(
                num_scalar_prefetch=0,
                grid=(grid_m,),
                in_specs=in_specs,
                out_specs=out_specs,
            ),
            compiler_params=pltpu.CompilerParams(
                dimension_semantics=("parallel",),   # row tiles shard across TCs
                vmem_limit_bytes=vmem_limit,
            ),
            cost_estimate=cost,
        )(x2d, w_t, b2d)

    try:
        out2d = _run(True)
    except Exception:
        # Fallback for environments where pipeline_mode / pl.Buffered is not
        # supported by the installed jax; identical semantics, default buffering.
        out2d = _run(False)

    return out2d.reshape(*lead, h_out)


if __name__ == "__main__":
    # Small, deterministic setup consistent with the module: hidden_size=32
    batch, seq, hidden = 2, 8, 32

    key = jax.random.PRNGKey(0)
    k_x, k_w, k_b = jax.random.split(key, 3)

    hidden_states = jax.random.normal(k_x, (batch, seq, hidden), dtype=jnp.float32)
    # nn.Linear(hidden, hidden): weight [out, in], bias [out]
    weight = jax.random.normal(k_w, (hidden, hidden), dtype=jnp.float32) * 0.02
    bias = jax.random.normal(k_b, (hidden,), dtype=jnp.float32) * 0.02

    ref = jnp.tanh(hidden_states @ weight.T + bias)

    # Single-tile path (M=16 <= TM): whole slab in one block.
    out = jax.block_until_ready(pooler_forward(hidden_states, weight, bias))
    assert out.shape == (batch, seq, hidden)
    assert jnp.allclose(out, ref, atol=1e-5, rtol=1e-5)

    # Multi-tile path: force TM=8 (aligned, grid_m=2) to exercise row tiling,
    # resident-weight index_maps, and the even-grid megacore path.
    out_tiled = jax.block_until_ready(pooler_forward(hidden_states, weight, bias, tm=8))
    assert jnp.allclose(out_tiled, ref, atol=1e-5, rtol=1e-5)

    # bf16 compute path (MXU-native operands, f32 accumulation + tanh).
    out_bf16 = jax.block_until_ready(
        pooler_forward(hidden_states, weight, bias, compute_dtype=jnp.bfloat16))
    assert out_bf16.dtype == hidden_states.dtype
    assert jnp.allclose(out_bf16, ref, atol=2e-2, rtol=2e-2)

    print("KERNEL_OK")
</pallas_src>

<mosaic_0001>
module attributes {stable_mosaic.version = 11 : i64} {
  func.func @pooler_kernel(%arg0: i32, %arg1: memref<16x32xf32, #tpu.memory_space<vmem>>, %arg2: memref<32x32xf32, #tpu.memory_space<vmem>>, %arg3: memref<1x32xf32, #tpu.memory_space<vmem>>, %arg4: memref<16x32xf32, #tpu.memory_space<vmem>>) attributes {dimension_semantics = [#tpu.dimension_semantics<parallel>], iteration_bounds = array<i64: 1>, scalar_prefetch = 0 : i64, scratch_operands = 0 : i64, tpu.core_type = #tpu.core_type<tc>, window_params = [{transform_indices = @transform_0, window_bounds = array<i64: 16, 32>}, {pipeline_mode = #tpu.pipeline_mode<synchronous>, transform_indices = @transform_1, window_bounds = array<i64: 32, 32>}, {pipeline_mode = #tpu.pipeline_mode<synchronous>, transform_indices = @transform_2, window_bounds = array<i64: 1, 32>}, {transform_indices = @transform_3, window_bounds = array<i64: 16, 32>}]} {
    %c0 = arith.constant 0 : index
    %c0_0 = arith.constant 0 : index
    %0 = vector.load %arg1[%c0, %c0_0] : memref<16x32xf32, #tpu.memory_space<vmem>>, vector<16x32xf32>
    %c0_1 = arith.constant 0 : index
    %c0_2 = arith.constant 0 : index
    %1 = vector.load %arg2[%c0_1, %c0_2] : memref<32x32xf32, #tpu.memory_space<vmem>>, vector<32x32xf32>
    %cst = arith.constant dense<0.000000e+00> : vector<16x32xf32>
    %2 = tpu.matmul %0, %1, %cst {dimension_numbers = #tpu.dot_dimension_numbers<[1], [0], [0], [1], [0, 0, 1, 1], [], []>} : vector<16x32xf32>, vector<32x32xf32>, vector<16x32xf32> -> vector<16x32xf32>
    %c0_3 = arith.constant 0 : index
    %c0_4 = arith.constant 0 : index
    %3 = vector.load %arg3[%c0_3, %c0_4] : memref<1x32xf32, #tpu.memory_space<vmem>>, vector<1x32xf32>
    %4 = vector.broadcast %3 : vector<1x32xf32> to vector<16x32xf32>
    %5 = arith.addf %2, %4 : vector<16x32xf32>
    %6 = math.tanh %5 : vector<16x32xf32>
    %c0_5 = arith.constant 0 : index
    %c0_6 = arith.constant 0 : index
    %7 = vector.load %arg4[%c0_5, %c0_6] : memref<16x32xf32, #tpu.memory_space<vmem>>, vector<16x32xf32>
    tpu.vector_store %arg4[%c0_5, %c0_6], %6 {strides = array<i32>} : memref<16x32xf32, #tpu.memory_space<vmem>>, vector<16x32xf32>,
    return
  }
  func.func @transform_0(%arg0: i32) -> (i32, i32) {
    %c0_i32 = arith.constant 0 : i32
    %c0_i32_0 = arith.constant 0 : i32
    return %arg0, %c0_i32 : i32, i32
  }
  func.func @transform_1(%arg0: i32) -> (i32, i32) {
    %c0_i32 = arith.constant 0 : i32
    %c0_i32_0 = arith.constant 0 : i32
    %c0_i32_1 = arith.constant 0 : i32
    return %c0_i32, %c0_i32_0 : i32, i32
  }
  func.func @transform_2(%arg0: i32) -> (i32, i32) {
    %c0_i32 = arith.constant 0 : i32
    %c0_i32_0 = arith.constant 0 : i32
    %c0_i32_1 = arith.constant 0 : i32
    return %c0_i32, %c0_i32_0 : i32, i32
  }
  func.func @transform_3(%arg0: i32) -> (i32, i32) {
    %c0_i32 = arith.constant 0 : i32
    %c0_i32_0 = arith.constant 0 : i32
    return %arg0, %c0_i32 : i32, i32
  }
}

</mosaic_0001>

<llo_original>
// kernel: tpu_custom_call.1
$region0: #{tpu_custom_call.1}
  #allocation0 [shape = 'u32[]', space=smem, size = 0x4, offset = 0x4, fixed_abs, tag = 'smem constant byte address 0x4 - core index']
  #allocation1 [shape = 'u32[144,128]{1,0:T(1,128)}', space=vmem, size = 0x12000, scoped, tag = 'internal scratch']
  %s0 = inlined_call_operand.hbm [shape: f32[16,32], index: 0, kind: input, shape index: {}]
  %s1 = inlined_call_operand.hbm [shape: f32[32,32], index: 1, kind: input, shape index: {}]
  %s2 = inlined_call_operand.vmem [shape: f32[1,32], index: 2, kind: input, shape index: {}]
  %s3 = inlined_call_operand.hbm [shape: f32[16,32], index: 3, kind: output, shape index: {}]
  %s4 = sld [smem:[#allocation0]]
  $region30: #{tpu_custom_call.1} parent=0
    _
  %s6 = ssub.s32 1, %s4
  %s7 = scalar_select 0, %s6, %s4
  $region1: #{tpu_custom_call.1} parent=0
    #allocation2 [shape = 'u8[8192]{0}', space=vmem, size = 0x2000, scoped, tag = 'input window, operand 0, single buffered']
    #allocation3 [shape = 's32[1]{0}', space=sflag, size = 0x4, scoped, tag = 'scoped memory for tpu_custom_call.1']
    #allocation4 [shape = 's32[1]{0}', space=sflag, size = 0x4, scoped, tag = 'scoped memory for tpu_custom_call.1']
    #allocation5 [shape = 'u8[16384]{0}', space=vmem, size = 0x4000, scoped, tag = 'input window, operand 1, single buffered']
    #allocation6 [shape = 's32[1]{0}', space=sflag, size = 0x4, scoped, tag = 'scoped memory for tpu_custom_call.1']
    #allocation7 [shape = 'u8[8192]{0}', space=vmem, size = 0x2000, scoped, tag = 'output window, operand 0, single buffered']
    %8 = vsyncpa [#allocation3], 0
    %9 = vsyncpa [#allocation6], 0
    %10 = vsyncpa [#allocation4], 0
    // Predicated region
    $region2: #{tpu_custom_call.1} parent=1 // pred_check
      _
    $region3: #{tpu_custom_call.1} parent=1 // pred_check_branch
      %12 = sbr.rel (0) target = $region5
    $region4: #{tpu_custom_call.1} parent=1 // pred_region
      %s14 = ssub.s32 256, 256
      %15 = vsyncadd [#allocation3], %s14
      %s16 = sshll.u32 [#allocation2], 4
      %s17 = int_to_ptr.vmem [resolvable:$true] %s16
      %22 = dma.hbm_to_vmem [thread:$0]  %s0, 256, %s17, [#allocation3], 128, 128, 8
    $region5: #{tpu_custom_call.1} parent=1 // pred_fallthru
      _
    // Predicated region
    $region6: #{tpu_custom_call.1} parent=1 // pred_check
      _
    $region7: #{tpu_custom_call.1} parent=1 // pred_check_branch
      %24 = sbr.rel (0) target = $region9
    $region8: #{tpu_custom_call.1} parent=1 // pred_region
      %s26 = ssub.s32 512, 512
      %27 = vsyncadd [#allocation6], %s26
      %s28 = sshll.u32 [#allocation5], 4
      %s29 = int_to_ptr.vmem [resolvable:$true] %s28
      %34 = dma.hbm_to_vmem [thread:$0]  %s1, 512, %s29, [#allocation6], 128, 128, 8
    $region9: #{tpu_custom_call.1} parent=1 // pred_fallthru
      _
    // Predicated region
    $region10: #{tpu_custom_call.1} parent=1 // pred_check
      _
    $region11: #{tpu_custom_call.1} parent=1 // pred_check_branch
      %36 = sbr.rel (0) target = $region13
    $region12: #{tpu_custom_call.1} parent=1 // pred_region
      _
    $region13: #{tpu_custom_call.1} parent=1 // pred_fallthru
      _
    // Predicated region
    $region14: #{tpu_custom_call.1} parent=1 // pred_check
      _
    $region15: #{tpu_custom_call.1} parent=1 // pred_check_branch
      %38 = sbr.rel (0) target = $region17
    $region16: #{tpu_custom_call.1} parent=1 // pred_region
      %39 = dma.done [#allocation3], 256
    $region17: #{tpu_custom_call.1} parent=1 // pred_fallthru
      _
    // Predicated region
    $region18: #{tpu_custom_call.1} parent=1 // pred_check
      _
    $region19: #{tpu_custom_call.1} parent=1 // pred_check_branch
      %41 = sbr.rel (0) target = $region21
    $region20: #{tpu_custom_call.1} parent=1 // pred_region
      %42 = dma.done [#allocation6], 512
    $region21: #{tpu_custom_call.1} parent=1 // pred_fallthru
      _
    %v43 = vld [vmem:[#allocation2] sm:$0xff]
    %v44 = vld [vmem:[#allocation2 + $0x8] sm:$0xff]
    %v45 = vld [vmem:[#allocation5] sm:$0xff]
    %v46 = vld [vmem:[#allocation5 + $0x8] sm:$0xff]
    %v47 = vld [vmem:[#allocation5 + $0x10] sm:$0xff]
    %v48 = vld [vmem:[#allocation5 + $0x18] sm:$0xff]
    %v49 = vld [vmem:[%s2] sm:$0x1]
    %v51 = vlaneseq
    %v52 = vshrl.u32 %v51, 7
    %v53 = vsub.s32 0, %v52
    %v54 = vrot.slane %v49, %v53
    %vm56 = vcmask 261120
    %v58 = vsel %vm56, %v43, 0
    %v61 = vsel %vm56, %v44, 0
    %63 = vmatprep.subr.mxu0 0.0
    %64 = vmatpush1.msra.mxu0 0.0
    %65 = vmatprep.subr.mxu0 0.0
    %66 = vmatpush1.msra.mxu0 0.0
    %67 = vmatprep.subr.mxu0 0.0
    %68 = vmatpush1.msra.mxu0 0.0
    %69 = vmatprep.subr.mxu0 0.0
    %70 = vmatpush1.msra.mxu0 0.0
    %71 = vmatprep.subr.mxu0 0.0
    %72 = vmatpush1.msra.mxu0 0.0
    %73 = vmatprep.subr.mxu0 0.0
    %74 = vmatpush1.msra.mxu0 0.0
    %75 = vmatprep.subr.mxu0 0.0
    %76 = vmatpush1.msra.mxu0 0.0
    %77 = vmatprep.subr.mxu0 0.0
    %78 = vmatpush1.msra.mxu0 0.0
    %79 = vmatprep.subr.mxu0 0.0
    %80 = vmatpush1.msra.mxu0 0.0
    %81 = vmatprep.subr.mxu0 0.0
    %82 = vmatpush1.msra.mxu0 0.0
    %83 = vmatprep.subr.mxu0 0.0
    %84 = vmatpush1.msra.mxu0 0.0
    %85 = vmatprep.subr.mxu0 0.0
    %86 = vmatpush1.msra.mxu0 0.0
    %87 = vmatprep.subr.mxu0 0.0
    %88 = vmatpush1.msra.mxu0 %v48
    %89 = vmatprep.subr.mxu0 0.0
    %90 = vmatpush1.msra.mxu0 %v47
    %91 = vmatprep.subr.mxu0 0.0
    %92 = vmatpush1.msra.mxu0 %v46
    %93 = vmatprep.subr.mxu0 0.0
    %94 = vmatpush1.msra.mxu0 %v45
    %95 = vmatprep.subr.mxu0 0.0
    %96 = vmatpush2.msra.mxu0 0.0
    %97 = vmatprep.subr.mxu0 0.0
    %98 = vmatpush2.msra.mxu0 0.0
    %99 = vmatprep.subr.mxu0 0.0
    %100 = vmatpush2.msra.mxu0 0.0
    %101 = vmatprep.subr.mxu0 0.0
    %102 = vmatpush2.msra.mxu0 0.0
    %103 = vmatprep.subr.mxu0 0.0
    %104 = vmatpush2.msra.mxu0 0.0
    %105 = vmatprep.subr.mxu0 0.0
    %106 = vmatpush2.msra.mxu0 0.0
    %107 = vmatprep.subr.mxu0 0.0
    %108 = vmatpush2.msra.mxu0 0.0
    %109 = vmatprep.subr.mxu0 0.0
    %110 = vmatpush2.msra.mxu0 0.0
    %111 = vmatprep.subr.mxu0 0.0
    %112 = vmatpush2.msra.mxu0 0.0
    %113 = vmatprep.subr.mxu0 0.0
    %114 = vmatpush2.msra.mxu0 0.0
    %115 = vmatprep.subr.mxu0 0.0
    %116 = vmatpush2.msra.mxu0 0.0
    %117 = vmatprep.subr.mxu0 0.0
    %118 = vmatpush2.msra.mxu0 0.0
    %119 = vmatprep.subr.mxu0 0.0
    %120 = vmatpush2.msra.mxu0 0.0
    %121 = vmatprep.subr.mxu0 0.0
    %122 = vmatpush2.msra.mxu0 0.0
    %123 = vmatprep.subr.mxu0 0.0
    %124 = vmatpush2.msra.mxu0 0.0
    %125 = vmatprep.subr.mxu0 0.0
    %126 = vmatpush2.msra.mxu0 0.0
    %127 = vmatprep.mubr.f32.mxu0 0.0
    %128 = vmatmul.mubr.f32.gmra.mxu0 %v58
    %v129 = vpop.f32.mrf.mxu0
    %v130 = vadd.f32 %v54, %v129
    %v131 = vpop.f32.mrf.mxu0
    %132 = vmatprep.mubr.f32.mxu0 0.0
    %133 = vmatmul.mubr.f32.gmra.mxu0 %v61
    %v134 = vpop.f32.mrf.mxu0
    %v135 = vadd.f32 %v54, %v134
    %v136 = vpop.f32.mrf.mxu0
    %137 = vdwg.mxu0
    %v138 = vtanh.pop %v130
    %v139 = vtanh.pop %v135
    %140 = vst.msk [vmem:[#allocation7] sm:$0xff] %vm56, %v138
    %141 = vst.msk [vmem:[#allocation7 + $0x8] sm:$0xff] %vm56, %v139
    // Predicated region
    $region22: #{tpu_custom_call.1} parent=1 // pred_check
      _
    $region23: #{tpu_custom_call.1} parent=1 // pred_check_branch
      %143 = sbr.rel (0) target = $region25
    $region24: #{tpu_custom_call.1} parent=1 // pred_region
      %s145 = ssub.s32 256, 256
      %146 = vsyncadd [#allocation4], %s145
      %s147 = sshll.u32 [#allocation7], 4
      %s148 = int_to_ptr.vmem [resolvable:$true] %s147
      %153 = dma.vmem_to_hbm [thread:$0]  %s148, 256, %s3, [#allocation4], 128, 128, 8
    $region25: #{tpu_custom_call.1} parent=1 // pred_fallthru
      _
    // Predicated region
    $region26: #{tpu_custom_call.1} parent=1 // pred_check
      _
    $region27: #{tpu_custom_call.1} parent=1 // pred_check_branch
      %155 = sbr.rel (0) target = $region29
    $region28: #{tpu_custom_call.1} parent=1 // pred_region
      %156 = dma.done [#allocation4], 256
    $region29: #{tpu_custom_call.1} parent=1 // pred_fallthru
      _
    %157 = vsyncpa [#allocation3], 1
    %158 = vsyncpa [#allocation6], 1
    %159 = vsyncpa [#allocation4], 1

</llo_original>
